<compile_context>
chip_gen: v7x
topology: tpu7x:2x2x1
jax: 0.10.0
libtpu: 0.0.40
codegen_flags: <defaults>
</compile_context>

<pallas_src>
import math
import functools

import jax
import jax.numpy as jnp
from jax.experimental import pallas as pl
from jax.experimental.pallas import tpu as pltpu

# ----- small config (mirrors PPAPLayer.__init__ structure) -------------------
D_NODE = 32
D_EDGE = 16
N_HEADS = 4
ATT_EMB = 32                 # original hard-codes 1280
D_HEAD = ATT_EMB // N_HEADS  # 8
D_OUT = 32                   # original to_h_c: att_emb -> 1280
D_IN = D_NODE * 2 + D_EDGE   # cat([hi, eij, hj], -1)

N_NODES = 8
N_EDGES = 16


# ----- Stage 1: edge projection + per-graph softmax + pooled feature ---------
def _ppap_edge_kernel(x_ref,                    # (B, E, D_IN)          bf16
                      wfused_ref, bfused_ref,   # (D_IN, ATT_EMB+H) bf16, (1, ATT_EMB+H) f32
                      expand_ref,               # (H, ATT_EMB) f32, block-diag one-hot
                      sel_ref,                  # (B, B*E)     f32, per-graph row selector
                      g_ref,                    # out: (B, ATT_EMB) f32
                      att_ref,                  # out: (B, E, H)    f32
                      *, att_emb, d_head, n_heads):
    b, e, d_in = x_ref.shape
    x = x_ref[...].reshape(b * e, d_in)                          # bf16, all graphs flat

    # fused att_mlp_c + node_mlp_c: one MXU pass (bf16 in, f32 accumulate)
    y = jnp.dot(x, wfused_ref[...],
                preferred_element_type=jnp.float32) + bfused_ref[...]   # (B*E, ATT_EMB+H)

    # --- attention branch: ReLU, /sqrt(d_head), EXACT softmax over edges per graph
    wlog = jnp.maximum(y[:, att_emb:], 0.0) * (1.0 / math.sqrt(d_head))  # (B*E, H)
    wlog3 = wlog.reshape(b, e, n_heads)
    m = jnp.max(wlog3, axis=1, keepdims=True)                    # (B, 1, H)
    p = jnp.exp(wlog3 - m)
    att3 = p / jnp.sum(p, axis=1, keepdims=True)                 # (B, E, H), exact division
    att_ref[...] = att3
    # TODO(synk): at production, store att lane-dense (B, H, n_edges) and mask
    # padded edge rows out of the max/sum when the edge axis gets tiled.

    # --- node branch: tanh-GELU (EUP-friendly stand-in for torch's erf GELU) ---
    v = jax.nn.gelu(y[:, :att_emb], approximate=True)            # (B*E, ATT_EMB) f32

    # --- einsum('nh,nhd->nhd').sum(n), per graph, on the MXU -------------------
    #   att_exp[m, c] = att[m, head(c)]   (head->column one-hot expansion)
    #   g[b, :]       = sum over rows m of graph b of att_exp[m,:]*v[m,:]
    att_exp = jnp.dot(att3.reshape(b * e, n_heads), expand_ref[...],
                      preferred_element_type=jnp.float32)        # (B*E, ATT_EMB)
    g_ref[...] = jnp.dot(sel_ref[...], att_exp * v,
                         preferred_element_type=jnp.float32)     # (B, ATT_EMB)


# ----- Stage 2: batched (M=B) ff_g + to_h_c -----------------------------------
def _ppap_ffn_kernel(g_ref,                     # (B, ATT_EMB) f32
                     wff1_ref, bff1_ref,        # (ATT_EMB, 4*ATT_EMB) bf16, (1, 4*ATT_EMB) f32
                     wff2_ref, bff2_ref,        # (4*ATT_EMB, ATT_EMB) bf16, (1, ATT_EMB) f32
                     wout_ref,                  # (ATT_EMB, D_OUT) bf16  (to_h_c, bias=False)
                     out_ref):                  # out: (B, D_OUT) f32
    g = g_ref[...].astype(jnp.bfloat16)
    g1 = jnp.dot(g, wff1_ref[...],
                 preferred_element_type=jnp.float32) + bff1_ref[...]
    g1 = jnp.maximum(g1, 0.0)
    g2 = jnp.dot(g1.astype(jnp.bfloat16), wff2_ref[...],
                 preferred_element_type=jnp.float32) + bff2_ref[...]
    out_ref[...] = jnp.dot(g2.astype(jnp.bfloat16), wout_ref[...],
                           preferred_element_type=jnp.float32)


# ----- helpers -----------------------------------------------------------------
def _vmem_limit_bytes(tensors):
    """Size the scoped-VMEM limit from actual operand bytes (2x headroom),
    floored at 4 MiB and capped at 56 MiB (headroom under v7x's 64 MiB)."""
    total = sum(math.prod(s) * jnp.dtype(d).itemsize for s, d in tensors)
    return int(min(max(2 * total, 4 << 20), 56 << 20))


# ----- pallas_call wrapper: whole batch in one invocation ----------------------
def ppap_pallas(x_batched, packed):
    """x_batched: (B, n_edges, D_IN) bf16 = cat(hi, eij, hj) per graph.
    Returns (gout (B, D_OUT) f32, att (B, n_edges, H) f32)."""
    b, e, d_in = x_batched.shape
    (wfused, bfused, expand, wff1, bff1, wff2, bff2, wout) = packed

    # per-graph row-selection matrix: sel[g, m] = 1 iff edge-row m belongs to graph g
    sel = (jnp.arange(b, dtype=jnp.int32)[:, None]
           == (jnp.arange(b * e, dtype=jnp.int32) // e)[None, :]).astype(jnp.float32)

    vmem = pl.BlockSpec(memory_space=pltpu.MemorySpace.VMEM)

    # ---- stage 1: edge kernel (no grid: whole batch is one block) -------------
    edge_kernel = functools.partial(_ppap_edge_kernel, att_emb=ATT_EMB,
                                    d_head=D_HEAD, n_heads=N_HEADS)
    s1_tensors = [(x_batched.shape, x_batched.dtype), (wfused.shape, wfused.dtype),
                  (bfused.shape, bfused.dtype), (expand.shape, expand.dtype),
                  (sel.shape, sel.dtype),
                  ((b, ATT_EMB), jnp.float32), ((b, e, N_HEADS), jnp.float32)]
    g, att = pl.pallas_call(
        edge_kernel,
        out_shape=(jax.ShapeDtypeStruct((b, ATT_EMB), jnp.float32),
                   jax.ShapeDtypeStruct((b, e, N_HEADS), jnp.float32)),
        in_specs=[vmem] * 5,
        out_specs=(vmem, vmem),
        compiler_params=pltpu.CompilerParams(
            vmem_limit_bytes=_vmem_limit_bytes(s1_tensors)),
    )(x_batched, wfused, bfused, expand, sel)

    # ---- stage 2: batched M=B FFN + output projection --------------------------
    s2_tensors = [((b, ATT_EMB), jnp.float32), (wff1.shape, wff1.dtype),
                  (bff1.shape, bff1.dtype), (wff2.shape, wff2.dtype),
                  (bff2.shape, bff2.dtype), (wout.shape, wout.dtype),
                  ((b, D_OUT), jnp.float32)]
    gout = pl.pallas_call(
        _ppap_ffn_kernel,
        out_shape=jax.ShapeDtypeStruct((b, D_OUT), jnp.float32),
        in_specs=[vmem] * 6,
        out_specs=vmem,
        compiler_params=pltpu.CompilerParams(
            vmem_limit_bytes=_vmem_limit_bytes(s2_tensors)),
    )(g, wff1, bff1, wff2, bff2, wout)

    return gout, att


# ----- parameter packing: fuse projections, one-hot mask, bf16 weights ---------
def pack_params(params):
    (watt, batt, wnode, bnode, wff1, bff1, wff2, bff2, wout) = params
    # node columns first (offset-0 slice is the wide one), att columns last.
    # bf16 weights feeding the MXU are intentional (f32 accumulation).
    wfused = jnp.concatenate([wnode, watt], axis=1).astype(jnp.bfloat16)   # (D_IN, ATT_EMB+H)
    bfused = jnp.concatenate([bnode, batt], axis=1).astype(jnp.float32)    # (1, ATT_EMB+H)
    head_of_col = jnp.arange(ATT_EMB, dtype=jnp.int32) // D_HEAD
    expand = (jnp.arange(N_HEADS, dtype=jnp.int32)[:, None]
              == head_of_col[None, :]).astype(jnp.float32)                 # (H, ATT_EMB)
    return (wfused, bfused, expand,
            wff1.astype(jnp.bfloat16), bff1.astype(jnp.float32),
            wff2.astype(jnp.bfloat16), bff2.astype(jnp.float32),
            wout.astype(jnp.bfloat16))


# ----- module-level wrapper (glue: gather + concat, same as torch forward) -----
def build_edge_features(h, edge_core, core_edge_idx):
    hi_c = h[core_edge_idx[0]]
    hj_c = h[core_edge_idx[1]]
    return jnp.concatenate([hi_c, edge_core, hj_c], axis=-1)    # (n_edges, D_IN) f32


def ppap_forward(h, edge_core, core_edge_idx, params):
    x = build_edge_features(h, edge_core, core_edge_idx).astype(jnp.bfloat16)
    gout, att = ppap_pallas(x[None], pack_params(params))
    # torch returns a 1-D global feature (1280,) -> here (D_OUT,)
    return h, edge_core, gout[0], att[0]


# ----- pure-JAX f32 reference (torch-module semantics) for a sanity check ------
def ppap_reference(h, edge_core, core_edge_idx, params):
    (watt, batt, wnode, bnode, wff1, bff1, wff2, bff2, wout) = params
    x = build_edge_features(h, edge_core, core_edge_idx)
    w = jnp.maximum(x @ watt + batt, 0.0) / math.sqrt(D_HEAD)
    att = jax.nn.softmax(w, axis=0)
    v = jax.nn.gelu(x @ wnode + bnode, approximate=False)       # torch nn.GELU(): exact erf
    v3 = v.reshape(x.shape[0], N_HEADS, D_HEAD)
    g = jnp.einsum('nh,nhd->nhd', att, v3).reshape(x.shape[0], ATT_EMB).sum(axis=0)
    g = jnp.maximum(g @ wff1 + bff1[0], 0.0) @ wff2 + bff2[0]
    return g @ wout, att


# ----- deterministic parameter init ---------------------------------------------
def init_params(key):
    ks = jax.random.split(key, 9)

    def lin(k, fan_in, fan_out):
        s = 1.0 / math.sqrt(fan_in)
        return jax.random.uniform(k, (fan_in, fan_out), jnp.float32, -s, s)

    watt = lin(ks[0], D_IN, N_HEADS)
    batt = jax.random.uniform(ks[1], (1, N_HEADS), jnp.float32, -0.1, 0.1)
    wnode = lin(ks[2], D_IN, ATT_EMB)
    bnode = jax.random.uniform(ks[3], (1, ATT_EMB), jnp.float32, -0.1, 0.1)
    wff1 = lin(ks[4], ATT_EMB, 4 * ATT_EMB)
    bff1 = jax.random.uniform(ks[5], (1, 4 * ATT_EMB), jnp.float32, -0.1, 0.1)
    wff2 = lin(ks[6], 4 * ATT_EMB, ATT_EMB)
    bff2 = jax.random.uniform(ks[7], (1, ATT_EMB), jnp.float32, -0.1, 0.1)
    wout = lin(ks[8], ATT_EMB, D_OUT)               # to_h_c: bias=False
    return (watt, batt, wnode, bnode, wff1, bff1, wff2, bff2, wout)


if __name__ == "__main__":
    key = jax.random.PRNGKey(0)
    k_h, k_e, k_idx, k_p, k_e2, k_idx2 = jax.random.split(key, 6)

    h = jax.random.normal(k_h, (N_NODES, D_NODE), jnp.float32)
    edge_core = jax.random.normal(k_e, (N_EDGES, D_EDGE), jnp.float32)
    core_edge_idx = jax.random.randint(k_idx, (2, N_EDGES), 0, N_NODES, jnp.int32)
    params = init_params(k_p)

    # ---- single-graph forward (exact module call signature) --------------------
    h_out, e_out, global_fea, att_c = jax.jit(ppap_forward)(h, edge_core, core_edge_idx, params)
    jax.block_until_ready((h_out, e_out, global_fea, att_c))

    ref_g, ref_att = ppap_reference(h, edge_core, core_edge_idx, params)
    assert global_fea.shape == (D_OUT,) and att_c.shape == (N_EDGES, N_HEADS)
    # tolerances are loose on purpose: MXU weights/activations are bf16 and the
    # node-branch GELU uses the tanh approximation (both intentional).
    assert jnp.allclose(att_c, ref_att, atol=2e-3, rtol=2e-2)
    assert jnp.allclose(global_fea, ref_g, atol=5e-2, rtol=5e-2)

    # ---- batched path: two independent edge-sets through one kernel invocation --
    edge_core2 = jax.random.normal(k_e2, (N_EDGES, D_EDGE), jnp.float32)
    core_edge_idx2 = jax.random.randint(k_idx2, (2, N_EDGES), 0, N_NODES, jnp.int32)
    x1 = build_edge_features(h, edge_core, core_edge_idx)
    x2 = build_edge_features(h, edge_core2, core_edge_idx2)
    xb = jnp.stack([x1, x2], axis=0).astype(jnp.bfloat16)        # (2, n_edges, D_IN)
    gb, ab = jax.jit(ppap_pallas)(xb, pack_params(params))
    jax.block_until_ready((gb, ab))

    ref_g2, ref_att2 = ppap_reference(h, edge_core2, core_edge_idx2, params)
    assert jnp.allclose(ab[0], ref_att, atol=2e-3, rtol=2e-2)
    assert jnp.allclose(ab[1], ref_att2, atol=2e-3, rtol=2e-2)
    assert jnp.allclose(gb[0], ref_g, atol=5e-2, rtol=5e-2)
    assert jnp.allclose(gb[1], ref_g2, atol=5e-2, rtol=5e-2)

    print("KERNEL_OK")
</pallas_src>

<mosaic_0001>
module attributes {stable_mosaic.version = 11 : i64} {
  func.func @_ppap_edge_kernel(%arg0: memref<1x16x80xbf16, #tpu.memory_space<vmem>>, %arg1: memref<80x36xbf16, #tpu.memory_space<vmem>>, %arg2: memref<1x36xf32, #tpu.memory_space<vmem>>, %arg3: memref<4x32xf32, #tpu.memory_space<vmem>>, %arg4: memref<1x16xf32, #tpu.memory_space<vmem>>, %arg5: memref<1x32xf32, #tpu.memory_space<vmem>>, %arg6: memref<1x16x4xf32, #tpu.memory_space<vmem>>) attributes {dimension_semantics = [], scalar_prefetch = 0 : i64, scratch_operands = 0 : i64, tpu.core_type = #tpu.core_type<tc>} {
    %c0 = arith.constant 0 : index
    %c0_0 = arith.constant 0 : index
    %c0_1 = arith.constant 0 : index
    %0 = vector.load %arg0[%c0, %c0_0, %c0_1] : memref<1x16x80xbf16, #tpu.memory_space<vmem>>, vector<1x16x80xbf16>
    %1 = vector.shape_cast %0 : vector<1x16x80xbf16> to vector<16x80xbf16>
    %c0_2 = arith.constant 0 : index
    %c0_3 = arith.constant 0 : index
    %2 = vector.load %arg1[%c0_2, %c0_3] : memref<80x36xbf16, #tpu.memory_space<vmem>>, vector<80x36xbf16>
    %cst = arith.constant dense<0.000000e+00> : vector<16x36xf32>
    %3 = tpu.matmul %1, %2, %cst {dimension_numbers = #tpu.dot_dimension_numbers<[1], [0], [0], [1], [0, 0, 1, 1], [], []>} : vector<16x80xbf16>, vector<80x36xbf16>, vector<16x36xf32> -> vector<16x36xf32>
    %c0_4 = arith.constant 0 : index
    %c0_5 = arith.constant 0 : index
    %4 = vector.load %arg2[%c0_4, %c0_5] : memref<1x36xf32, #tpu.memory_space<vmem>>, vector<1x36xf32>
    %5 = vector.broadcast %4 : vector<1x36xf32> to vector<16x36xf32>
    %6 = arith.addf %3, %5 : vector<16x36xf32>
    %7 = vector.extract_strided_slice %6 {offsets = [0, 32], sizes = [16, 4], strides = [1, 1]} : vector<16x36xf32> to vector<16x4xf32>
    %cst_6 = arith.constant 0.000000e+00 : f32
    %8 = vector.broadcast %cst_6 : f32 to vector<16x4xf32>
    %9 = arith.maximumf %7, %8 : vector<16x4xf32>
    %cst_7 = arith.constant 0.353553385 : f32
    %10 = vector.broadcast %cst_7 : f32 to vector<16x4xf32>
    %11 = arith.mulf %9, %10 : vector<16x4xf32>
    %12 = vector.shape_cast %11 : vector<16x4xf32> to vector<1x16x4xf32>
    %cst_8 = arith.constant dense<0xFF800000> : vector<1x4xf32>
    %13 = vector.multi_reduction <maximumf>, %12, %cst_8 [1] : vector<1x16x4xf32> to vector<1x4xf32>
    %14 = vector.shape_cast %13 : vector<1x4xf32> to vector<1x1x4xf32>
    %15 = vector.broadcast %14 : vector<1x1x4xf32> to vector<1x16x4xf32>
    %16 = arith.subf %12, %15 : vector<1x16x4xf32>
    %17 = math.exp %16 : vector<1x16x4xf32>
    %cst_9 = arith.constant dense<0.000000e+00> : vector<1x4xf32>
    %18 = vector.multi_reduction <add>, %17, %cst_9 [1] : vector<1x16x4xf32> to vector<1x4xf32>
    %19 = vector.shape_cast %18 : vector<1x4xf32> to vector<1x1x4xf32>
    %20 = vector.broadcast %19 : vector<1x1x4xf32> to vector<1x16x4xf32>
    %21 = arith.divf %17, %20 : vector<1x16x4xf32>
    %c0_10 = arith.constant 0 : index
    %c0_11 = arith.constant 0 : index
    %c0_12 = arith.constant 0 : index
    %22 = vector.load %arg6[%c0_10, %c0_11, %c0_12] : memref<1x16x4xf32, #tpu.memory_space<vmem>>, vector<1x16x4xf32>
    tpu.vector_store %arg6[%c0_10, %c0_11, %c0_12], %21 {strides = array<i32>} : memref<1x16x4xf32, #tpu.memory_space<vmem>>, vector<1x16x4xf32>,
    %23 = vector.extract_strided_slice %6 {offsets = [0, 0], sizes = [16, 32], strides = [1, 1]} : vector<16x36xf32> to vector<16x32xf32>
    %24 = arith.mulf %23, %23 : vector<16x32xf32>
    %25 = arith.mulf %23, %24 : vector<16x32xf32>
    %cst_13 = arith.constant 4.471500e-02 : f32
    %26 = vector.broadcast %cst_13 : f32 to vector<16x32xf32>
    %27 = arith.mulf %26, %25 : vector<16x32xf32>
    %28 = arith.addf %23, %27 : vector<16x32xf32>
    %cst_14 = arith.constant 0.797884583 : f32
    %29 = vector.broadcast %cst_14 : f32 to vector<16x32xf32>
    %30 = arith.mulf %29, %28 : vector<16x32xf32>
    %31 = math.tanh %30 : vector<16x32xf32>
    %cst_15 = arith.constant 1.000000e+00 : f32
    %32 = vector.broadcast %cst_15 : f32 to vector<16x32xf32>
    %33 = arith.addf %32, %31 : vector<16x32xf32>
    %cst_16 = arith.constant 5.000000e-01 : f32
    %34 = vector.broadcast %cst_16 : f32 to vector<16x32xf32>
    %35 = arith.mulf %34, %33 : vector<16x32xf32>
    %36 = arith.mulf %23, %35 : vector<16x32xf32>
    %37 = vector.shape_cast %21 : vector<1x16x4xf32> to vector<16x4xf32>
    %c0_17 = arith.constant 0 : index
    %c0_18 = arith.constant 0 : index
    %38 = vector.load %arg3[%c0_17, %c0_18] : memref<4x32xf32, #tpu.memory_space<vmem>>, vector<4x32xf32>
    %cst_19 = arith.constant dense<0.000000e+00> : vector<16x32xf32>
    %39 = tpu.matmul %37, %38, %cst_19 {dimension_numbers = #tpu.dot_dimension_numbers<[1], [0], [0], [1], [0, 0, 1, 1], [], []>} : vector<16x4xf32>, vector<4x32xf32>, vector<16x32xf32> -> vector<16x32xf32>
    %c0_20 = arith.constant 0 : index
    %c0_21 = arith.constant 0 : index
    %40 = vector.load %arg4[%c0_20, %c0_21] : memref<1x16xf32, #tpu.memory_space<vmem>>, vector<1x16xf32>
    %41 = arith.mulf %39, %36 : vector<16x32xf32>
    %cst_22 = arith.constant dense<0.000000e+00> : vector<1x32xf32>
    %42 = tpu.matmul %40, %41, %cst_22 {dimension_numbers = #tpu.dot_dimension_numbers<[1], [0], [0], [1], [0, 0, 1, 1], [], []>} : vector<1x16xf32>, vector<16x32xf32>, vector<1x32xf32> -> vector<1x32xf32>
    %c0_23 = arith.constant 0 : index
    %c0_24 = arith.constant 0 : index
    %43 = vector.load %arg5[%c0_23, %c0_24] : memref<1x32xf32, #tpu.memory_space<vmem>>, vector<1x32xf32>
    tpu.vector_store %arg5[%c0_23, %c0_24], %42 {strides = array<i32>} : memref<1x32xf32, #tpu.memory_space<vmem>>, vector<1x32xf32>,
    return
  }
}

module attributes {stable_mosaic.version = 11 : i64} {
  func.func @_ppap_ffn_kernel(%arg0: memref<1x32xf32, #tpu.memory_space<vmem>>, %arg1: memref<32x128xbf16, #tpu.memory_space<vmem>>, %arg2: memref<1x128xf32, #tpu.memory_space<vmem>>, %arg3: memref<128x32xbf16, #tpu.memory_space<vmem>>, %arg4: memref<1x32xf32, #tpu.memory_space<vmem>>, %arg5: memref<32x32xbf16, #tpu.memory_space<vmem>>, %arg6: memref<1x32xf32, #tpu.memory_space<vmem>>) attributes {dimension_semantics = [], scalar_prefetch = 0 : i64, scratch_operands = 0 : i64, tpu.core_type = #tpu.core_type<tc>} {
    %c0 = arith.constant 0 : index
    %c0_0 = arith.constant 0 : index
    %0 = vector.load %arg0[%c0, %c0_0] : memref<1x32xf32, #tpu.memory_space<vmem>>, vector<1x32xf32>
    %1 = arith.truncf %0 : vector<1x32xf32> to vector<1x32xbf16>
    %c0_1 = arith.constant 0 : index
    %c0_2 = arith.constant 0 : index
    %2 = vector.load %arg1[%c0_1, %c0_2] : memref<32x128xbf16, #tpu.memory_space<vmem>>, vector<32x128xbf16>
    %cst = arith.constant dense<0.000000e+00> : vector<1x128xf32>
    %3 = tpu.matmul %1, %2, %cst {dimension_numbers = #tpu.dot_dimension_numbers<[1], [0], [0], [1], [0, 0, 1, 1], [], []>} : vector<1x32xbf16>, vector<32x128xbf16>, vector<1x128xf32> -> vector<1x128xf32>
    %c0_3 = arith.constant 0 : index
    %c0_4 = arith.constant 0 : index
    %4 = vector.load %arg2[%c0_3, %c0_4] : memref<1x128xf32, #tpu.memory_space<vmem>>, vector<1x128xf32>
    %5 = arith.addf %3, %4 : vector<1x128xf32>
    %cst_5 = arith.constant 0.000000e+00 : f32
    %6 = vector.broadcast %cst_5 : f32 to vector<1x128xf32>
    %7 = arith.maximumf %5, %6 : vector<1x128xf32>
    %8 = arith.truncf %7 : vector<1x128xf32> to vector<1x128xbf16>
    %c0_6 = arith.constant 0 : index
    %c0_7 = arith.constant 0 : index
    %9 = vector.load %arg3[%c0_6, %c0_7] : memref<128x32xbf16, #tpu.memory_space<vmem>>, vector<128x32xbf16>
    %cst_8 = arith.constant dense<0.000000e+00> : vector<1x32xf32>
    %10 = tpu.matmul %8, %9, %cst_8 {dimension_numbers = #tpu.dot_dimension_numbers<[1], [0], [0], [1], [0, 0, 1, 1], [], []>} : vector<1x128xbf16>, vector<128x32xbf16>, vector<1x32xf32> -> vector<1x32xf32>
    %c0_9 = arith.constant 0 : index
    %c0_10 = arith.constant 0 : index
    %11 = vector.load %arg4[%c0_9, %c0_10] : memref<1x32xf32, #tpu.memory_space<vmem>>, vector<1x32xf32>
    %12 = arith.addf %10, %11 : vector<1x32xf32>
    %13 = arith.truncf %12 : vector<1x32xf32> to vector<1x32xbf16>
    %c0_11 = arith.constant 0 : index
    %c0_12 = arith.constant 0 : index
    %14 = vector.load %arg5[%c0_11, %c0_12] : memref<32x32xbf16, #tpu.memory_space<vmem>>, vector<32x32xbf16>
    %cst_13 = arith.constant dense<0.000000e+00> : vector<1x32xf32>
    %15 = tpu.matmul %13, %14, %cst_13 {dimension_numbers = #tpu.dot_dimension_numbers<[1], [0], [0], [1], [0, 0, 1, 1], [], []>} : vector<1x32xbf16>, vector<32x32xbf16>, vector<1x32xf32> -> vector<1x32xf32>
    %c0_14 = arith.constant 0 : index
    %c0_15 = arith.constant 0 : index
    %16 = vector.load %arg6[%c0_14, %c0_15] : memref<1x32xf32, #tpu.memory_space<vmem>>, vector<1x32xf32>
    tpu.vector_store %arg6[%c0_14, %c0_15], %15 {strides = array<i32>} : memref<1x32xf32, #tpu.memory_space<vmem>>, vector<1x32xf32>,
    return
  }
}

</mosaic_0001>

<llo_original>
// kernel: ppap_forward.2
$region0: #{ppap_forward.2}
  #allocation0 [shape = 'u32[]', space=smem, size = 0x4, offset = 0x4, fixed_abs, tag = 'smem constant byte address 0x4 - core index']
  #allocation1 [shape = 'u32[144,128]{1,0:T(1,128)}', space=vmem, size = 0x12000, scoped, tag = 'internal scratch']
  %s0 = inlined_call_operand.vmem [shape: bf16[1,16,80], index: 0, kind: input, shape index: {}]
  %s1 = inlined_call_operand.vmem [shape: bf16[80,36], index: 1, kind: input, shape index: {}]
  %s2 = inlined_call_operand.vmem [shape: f32[1,36], index: 2, kind: input, shape index: {}]
  %s3 = inlined_call_operand.vmem [shape: f32[4,32], index: 3, kind: input, shape index: {}]
  %s4 = inlined_call_operand.vmem [shape: f32[1,16], index: 4, kind: input, shape index: {}]
  %s5 = inlined_call_operand.vmem [shape: f32[1,32], index: 5, kind: output, shape index: {0}]
  %s6 = inlined_call_operand.vmem [shape: f32[1,16,4], index: 6, kind: output, shape index: {1}]
  %7 = xla_tuple %s5, %s6
  %s8 = sld [smem:[#allocation0]]
  $region38: #{ppap_forward.2} parent=0
    _
  %s10 = ssub.s32 1, %s8
  %s11 = scalar_select 0, %s10, %s8
  // Predicated region
  $region2: #{ppap_forward.2} parent=0 // pred_check
    _
  $region3: #{ppap_forward.2} parent=0 // pred_check_branch
    %13 = sbr.rel (0) target = $region5
  $region4: #{ppap_forward.2} parent=0 // pred_region
    _
  $region5: #{ppap_forward.2} parent=0 // pred_fallthru
    _
  // Predicated region
  $region6: #{ppap_forward.2} parent=0 // pred_check
    _
  $region7: #{ppap_forward.2} parent=0 // pred_check_branch
    %15 = sbr.rel (0) target = $region9
  $region8: #{ppap_forward.2} parent=0 // pred_region
    _
  $region9: #{ppap_forward.2} parent=0 // pred_fallthru
    _
  // Predicated region
  $region10: #{ppap_forward.2} parent=0 // pred_check
    _
  $region11: #{ppap_forward.2} parent=0 // pred_check_branch
    %17 = sbr.rel (0) target = $region13
  $region12: #{ppap_forward.2} parent=0 // pred_region
    _
  $region13: #{ppap_forward.2} parent=0 // pred_fallthru
    _
  // Predicated region
  $region14: #{ppap_forward.2} parent=0 // pred_check
    _
  $region15: #{ppap_forward.2} parent=0 // pred_check_branch
    %19 = sbr.rel (0) target = $region17
  $region16: #{ppap_forward.2} parent=0 // pred_region
    _
  $region17: #{ppap_forward.2} parent=0 // pred_fallthru
    _
  // Predicated region
  $region18: #{ppap_forward.2} parent=0 // pred_check
    _
  $region19: #{ppap_forward.2} parent=0 // pred_check_branch
    %21 = sbr.rel (0) target = $region21
  $region20: #{ppap_forward.2} parent=0 // pred_region
    _
  $region21: #{ppap_forward.2} parent=0 // pred_fallthru
    _
  %v23 = vld [vmem:[%s0] sm:$0xf]
  %v24 = vld [vmem:[%s0 + $0x4] sm:$0xf]
  %v25 = vld [vmem:[%s1] sm:$0xf]
  %v26 = vld [vmem:[%s1 + $0x4] sm:$0xf]
  %v27 = vld [vmem:[%s1 + $0x8] sm:$0xf]
  %v28 = vld [vmem:[%s1 + $0xc] sm:$0xf]
  %v29 = vld [vmem:[%s1 + $0x10] sm:$0xf]
  %v30 = vld [vmem:[%s1 + $0x14] sm:$0xf]
  %v31 = vld [vmem:[%s1 + $0x18] sm:$0xf]
  %v32 = vld [vmem:[%s1 + $0x1c] sm:$0xf]
  %v33 = vld [vmem:[%s1 + $0x20] sm:$0xf]
  %v34 = vld [vmem:[%s1 + $0x24] sm:$0xf]
  %v35 = vld [vmem:[%s2] sm:$0x1]
  %v37 = vlaneseq
  %v38 = vshrl.u32 %v37, 7
  %v39 = vsub.s32 0, %v38
  %v40 = vrot.slane %v35, %v39
  %v44 = vunpack.c.l.b16 %v23
  %v45 = vunpack.c.l.b16 %v24
  %v46 = vpack.c.b16 %v45, %v44
  %v57 = vunpack.c.l.b16 %v25
  %v58 = vunpack.c.l.b16 %v26
  %v59 = vunpack.c.l.b16 %v27
  %v60 = vunpack.c.l.b16 %v28
  %v61 = vunpack.c.l.b16 %v29
  %v62 = vunpack.c.l.b16 %v30
  %v63 = vunpack.c.l.b16 %v31
  %v64 = vunpack.c.l.b16 %v32
  %v65 = vunpack.c.l.b16 %v33
  %v66 = vunpack.c.l.b16 %v34
  %v67 = vpack.c.b16 %v58, %v57
  %v68 = vpack.c.b16 %v60, %v59
  %v69 = vpack.c.b16 %v62, %v61
  %v70 = vpack.c.b16 %v64, %v63
  %v71 = vpack.c.b16 %v66, %v65
  %vm77 = vcmask 654336
  %v79 = vsel %vm77, %v46, 0
  %81 = vmatprep.subr.bf16.mxu0 0
  %82 = vmatpush1.bf16.msra.mxu0 %v67
  %83 = vmatprep.subr.bf16.mxu0 0
  %84 = vmatpush1.bf16.msra.mxu0 %v68
  %85 = vmatprep.subr.bf16.mxu0 0
  %86 = vmatpush1.bf16.msra.mxu0 %v69
  %87 = vmatprep.subr.bf16.mxu0 0
  %88 = vmatpush1.bf16.msra.mxu0 %v70
  %89 = vmatprep.subr.bf16.mxu0 0
  %90 = vmatpush1.bf16.msra.mxu0 %v71
  %91 = vmatprep.subr.bf16.mxu0 0
  %92 = vmatpush1.bf16.msra.mxu0 0
  %93 = vmatprep.subr.bf16.mxu0 0
  %94 = vmatpush1.bf16.msra.mxu0 0
  %95 = vmatprep.subr.bf16.mxu0 0
  %96 = vmatpush1.bf16.msra.mxu0 0
  %97 = vmatprep.subr.bf16.mxu0 0
  %98 = vmatpush1.bf16.msra.mxu0 0
  %99 = vmatprep.subr.bf16.mxu0 0
  %100 = vmatpush1.bf16.msra.mxu0 0
  %101 = vmatprep.subr.bf16.mxu0 0
  %102 = vmatpush1.bf16.msra.mxu0 0
  %103 = vmatprep.subr.bf16.mxu0 0
  %104 = vmatpush1.bf16.msra.mxu0 0
  %105 = vmatprep.subr.bf16.mxu0 0
  %106 = vmatpush1.bf16.msra.mxu0 0
  %107 = vmatprep.subr.bf16.mxu0 0
  %108 = vmatpush1.bf16.msra.mxu0 0
  %109 = vmatprep.subr.bf16.mxu0 0
  %110 = vmatpush1.bf16.msra.mxu0 0
  %111 = vmatprep.subr.bf16.mxu0 0
  %112 = vmatpush1.bf16.msra.mxu0 0
  %113 = vmatprep.mubr.bf16.mxu0 0
  %114 = vmatmul.mubr.bf16.gmra.mrb[0].mxu0 %v79
  %v115 = vpop.f32.mrb[0].mxu0
  %v116 = vadd.f32 %v40, %v115
  %v117 = vpop.f32.mrb[0].mxu0
  %v118 = vpop.f32.mrb[0].mxu0
  %v119 = vadd.f32 %v40, %v118
  %v120 = vpop.f32.mrb[0].mxu0
  %121 = vdwg.mxu0
  %v122 = vmax.f32 %v116, 0.0
  %v123 = vmax.f32 %v119, 0.0
  %v124 = vmul.f32 %v122, 0.35355338
  %v125 = vmul.f32 %v123, 0.35355338
  %vm126 = vcmask 294144
  %v127 = vsel %vm126, %v124, -inf
  %v128 = vsel %vm126, %v125, -inf
  %v129 = vmax.f32 %v127, %v128
  %v130 = vrot.slane %v129, 4
  %v131 = vmax.f32 %v129, %v130
  %v132 = vrot.slane %v131, 2
  %v133 = vmax.f32 %v131, %v132
  %v134 = vrot.slane %v133, 1
  %v135 = vmax.f32 %v133, %v134
  %v136 = vsub.f32 %v124, %v135
  %v137 = vsub.f32 %v125, %v135
  %v138 = vmul.f32 %v136, 1.442695
  %v139 = vpow.pop %v138
  %v140 = vmul.f32 %v137, 1.442695
  %v141 = vpow.pop %v140
  %v142 = vsel %vm126, %v139, 0.0
  %v143 = vsel %vm126, %v141, 0.0
  %v144 = vadd.f32 %v142, %v143
  %v145 = vrot.slane %v144, 4
  %v146 = vadd.f32 %v144, %v145
  %v147 = vrot.slane %v146, 2
  %v148 = vadd.f32 %v146, %v147
  %v149 = vrot.slane %v148, 1
  %v150 = vadd.f32 %v148, %v149
  %v151 = vrcp.pop %v150
  %v152 = vmul.f32 %v139, %v151
  %v153 = vmul.f32 %v141, %v151
  %156 = vrot.lane.b32.xlu0 %v152, 96
  %v157 = vpop.permute.xlu0 %156
  %158 = vrot.lane.b32.xlu0 %v153, 96
  %v159 = vpop.permute.xlu0 %158
  %vm162 = vcmask 31744
  %163 = vst.msk [vmem:[%s6] sm:$0xff] %vm162, %v157
  %164 = vst.msk [vmem:[%s6 + $0x8] sm:$0xff] %vm162, %v159
  %v165 = vmul.f32 %v116, %v116
  %v166 = vmul.f32 %v119, %v119
  %v167 = vmul.f32 %v116, %v165
  %v168 = vmul.f32 %v119, %v166
  %v169 = vmul.f32 %v167, 0.044715
  %v170 = vmul.f32 %v168, 0.044715
  %v171 = vadd.f32 %v116, %v169
  %v172 = vadd.f32 %v119, %v170
  %v173 = vmul.f32 %v171, 0.7978846
  %v174 = vmul.f32 %v172, 0.7978846
  %v175 = vtanh.pop %v173
  %v176 = vtanh.pop %v174
  %v177 = vadd.f32 %v175, 1.0
  %v178 = vadd.f32 %v176, 1.0
  %v179 = vmul.f32 %v177, 0.5
  %v180 = vmul.f32 %v178, 0.5
  %v181 = vmul.f32 %v116, %v179
  %v182 = vmul.f32 %v119, %v180
  %v183 = vld [vmem:[%s3] sm:$0xf]
  %v184 = vsel %vm162, %v157, 0
  %v186 = vsel %vm162, %v159, 0
  %vm188 = vcmask 1043456
  %v190 = vsel %vm188, %v183, 0
  %192 = vmatprep.subr.mxu0 0.0
  %193 = vmatpush1.msra.mxu0 %v190
  %194 = vmatprep.subr.mxu0 0.0
  %195 = vmatpush1.msra.mxu0 0.0
  %196 = vmatprep.subr.mxu0 0.0
  %197 = vmatpush1.msra.mxu0 0.0
  %198 = vmatprep.subr.mxu0 0.0
  %199 = vmatpush1.msra.mxu0 0.0
  %200 = vmatprep.subr.mxu0 0.0
  %201 = vmatpush1.msra.mxu0 0.0
  %202 = vmatprep.subr.mxu0 0.0
  %203 = vmatpush1.msra.mxu0 0.0
  %204 = vmatprep.subr.mxu0 0.0
  %205 = vmatpush1.msra.mxu0 0.0
  %206 = vmatprep.subr.mxu0 0.0
  %207 = vmatpush1.msra.mxu0 0.0
  %208 = vmatprep.subr.mxu0 0.0
  %209 = vmatpush1.msra.mxu0 0.0
  %210 = vmatprep.subr.mxu0 0.0
  %211 = vmatpush1.msra.mxu0 0.0
  %212 = vmatprep.subr.mxu0 0.0
  %213 = vmatpush1.msra.mxu0 0.0
  %214 = vmatprep.subr.mxu0 0.0
  %215 = vmatpush1.msra.mxu0 0.0
  %216 = vmatprep.subr.mxu0 0.0
  %217 = vmatpush1.msra.mxu0 0.0
  %218 = vmatprep.subr.mxu0 0.0
  %219 = vmatpush1.msra.mxu0 0.0
  %220 = vmatprep.subr.mxu0 0.0
  %221 = vmatpush1.msra.mxu0 0.0
  %222 = vmatprep.subr.mxu0 0.0
  %223 = vmatpush1.msra.mxu0 0.0
  %224 = vmatprep.subr.mxu0 0.0
  %225 = vmatpush1.msra.mxu0 0.0
  %226 = vmatprep.subr.mxu0 0.0
  %227 = vmatpush1.msra.mxu0 0.0
  %228 = vmatprep.subr.mxu0 0.0
  %229 = vmatpush1.msra.mxu0 0.0
  %230 = vmatprep.subr.mxu0 0.0
  %231 = vmatpush1.msra.mxu0 0.0
  %232 = vmatprep.subr.mxu0 0.0
  %233 = vmatpush1.msra.mxu0 0.0
  %234 = vmatprep.subr.mxu0 0.0
  %235 = vmatpush1.msra.mxu0 0.0
  %236 = vmatprep.subr.mxu0 0.0
  %237 = vmatpush1.msra.mxu0 0.0
  %238 = vmatprep.subr.mxu0 0.0
  %239 = vmatpush1.msra.mxu0 0.0
  %240 = vmatprep.subr.mxu0 0.0
  %241 = vmatpush1.msra.mxu0 0.0
  %242 = vmatprep.subr.mxu0 0.0
  %243 = vmatpush1.msra.mxu0 0.0
  %244 = vmatprep.subr.mxu0 0.0
  %245 = vmatpush1.msra.mxu0 0.0
  %246 = vmatprep.subr.mxu0 0.0
  %247 = vmatpush1.msra.mxu0 0.0
  %248 = vmatprep.subr.mxu0 0.0
  %249 = vmatpush1.msra.mxu0 0.0
  %250 = vmatprep.subr.mxu0 0.0
  %251 = vmatpush1.msra.mxu0 0.0
  %252 = vmatprep.subr.mxu0 0.0
  %253 = vmatpush1.msra.mxu0 0.0
  %254 = vmatprep.subr.mxu0 0.0
  %255 = vmatpush1.msra.mxu0 0.0
  %256 = vmatprep.mubr.f32.mxu0 0.0
  %257 = vmatmul.mubr.f32.gmra.mrb[0].mxu0 %v184
  %v258 = vpop.f32.mrb[0].mxu0
  %v259 = vadd.f32 0.0, %v258
  %v260 = vpop.f32.mrb[0].mxu0
  %261 = vmatprep.mubr.f32.mxu0 0.0
  %262 = vmatmul.mubr.f32.gmra.mrb[0].mxu0 %v186
  %v263 = vpop.f32.mrb[0].mxu0
  %v264 = vadd.f32 0.0, %v263
  %v265 = vpop.f32.mrb[0].mxu0
  %266 = vdwg.mxu0
  %v267 = vld [vmem:[%s4] sm:$0x1]
  %v268 = vmul.f32 %v259, %v181
  %v269 = vmul.f32 %v264, %v182
  %vm270 = vcmask 130048
  %v272 = vsel %vm270, %v267, 0
  %274 = vmatprep.subr.mxu0 0.0
  %275 = vmatpush1.msra.mxu0 %v268
  %276 = vmatprep.subr.mxu0 0.0
  %277 = vmatpush1.msra.mxu0 %v269
  %278 = vmatprep.subr.mxu0 0.0
  %279 = vmatpush1.msra.mxu0 0.0
  %280 = vmatprep.subr.mxu0 0.0
  %281 = vmatpush1.msra.mxu0 0.0
  %282 = vmatprep.subr.mxu0 0.0
  %283 = vmatpush1.msra.mxu0 0.0
  %284 = vmatprep.subr.mxu0 0.0
  %285 = vmatpush1.msra.mxu0 0.0
  %286 = vmatprep.subr.mxu0 0.0
  %287 = vmatpush1.msra.mxu0 0.0
  %288 = vmatprep.subr.mxu0 0.0
  %289 = vmatpush1.msra.mxu0 0.0
  %290 = vmatprep.subr.mxu0 0.0
  %291 = vmatpush1.msra.mxu0 0.0
  %292 = vmatprep.subr.mxu0 0.0
  %293 = vmatpush1.msra.mxu0 0.0
  %294 = vmatprep.subr.mxu0 0.0
  %295 = vmatpush1.msra.mxu0 0.0
  %296 = vmatprep.subr.mxu0 0.0
  %297 = vmatpush1.msra.mxu0 0.0
  %298 = vmatprep.subr.mxu0 0.0
  %299 = vmatpush1.msra.mxu0 0.0
  %300 = vmatprep.subr.mxu0 0.0
  %301 = vmatpush1.msra.mxu0 0.0
  %302 = vmatprep.subr.mxu0 0.0
  %303 = vmatpush1.msra.mxu0 0.0
  %304 = vmatprep.subr.mxu0 0.0
  %305 = vmatpush1.msra.mxu0 0.0
  %306 = vmatprep.subr.mxu0 0.0
  %307 = vmatpush1.msra.mxu0 0.0
  %308 = vmatprep.subr.mxu0 0.0
  %309 = vmatpush1.msra.mxu0 0.0
  %310 = vmatprep.subr.mxu0 0.0
  %311 = vmatpush1.msra.mxu0 0.0
  %312 = vmatprep.subr.mxu0 0.0
  %313 = vmatpush1.msra.mxu0 0.0
  %314 = vmatprep.subr.mxu0 0.0
  %315 = vmatpush1.msra.mxu0 0.0
  %316 = vmatprep.subr.mxu0 0.0
  %317 = vmatpush1.msra.mxu0 0.0
  %318 = vmatprep.subr.mxu0 0.0
  %319 = vmatpush1.msra.mxu0 0.0
  %320 = vmatprep.subr.mxu0 0.0
  %321 = vmatpush1.msra.mxu0 0.0
  %322 = vmatprep.subr.mxu0 0.0
  %323 = vmatpush1.msra.mxu0 0.0
  %324 = vmatprep.subr.mxu0 0.0
  %325 = vmatpush1.msra.mxu0 0.0
  %326 = vmatprep.subr.mxu0 0.0
  %327 = vmatpush1.msra.mxu0 0.0
  %328 = vmatprep.subr.mxu0 0.0
  %329 = vmatpush1.msra.mxu0 0.0
  %330 = vmatprep.subr.mxu0 0.0
  %331 = vmatpush1.msra.mxu0 0.0
  %332 = vmatprep.subr.mxu0 0.0
  %333 = vmatpush1.msra.mxu0 0.0
  %334 = vmatprep.subr.mxu0 0.0
  %335 = vmatpush1.msra.mxu0 0.0
  %336 = vmatprep.subr.mxu0 0.0
  %337 = vmatpush1.msra.mxu0 0.0
  %338 = vmatprep.mubr.f32.mxu0 0.0
  %339 = vmatmul.mubr.f32.gmra.mrb[0].mxu0 %v272
  %v340 = vpop.f32.mrb[0].mxu0
  %v341 = vadd.f32 0.0, %v340
  %v342 = vpop.f32.mrb[0].mxu0
  %343 = vdwg.mxu0
  %vm344 = vcmask 253952
  %345 = vst.msk [vmem:[%s5] sm:$0x1] %vm344, %v341
  // Predicated region
  $region22: #{ppap_forward.2} parent=0 // pred_check
    _
  $region23: #{ppap_forward.2} parent=0 // pred_check_branch
    %347 = sbr.rel (0) target = $region25
  $region24: #{ppap_forward.2} parent=0 // pred_region
    _
  $region25: #{ppap_forward.2} parent=0 // pred_fallthru
    _
  // Predicated region
  $region26: #{ppap_forward.2} parent=0 // pred_check
    _
  $region27: #{ppap_forward.2} parent=0 // pred_check_branch
    %349 = sbr.rel (0) target = $region29
  $region28: #{ppap_forward.2} parent=0 // pred_region
    _
  $region29: #{ppap_forward.2} parent=0 // pred_fallthru
    _
  // Predicated region
  $region30: #{ppap_forward.2} parent=0 // pred_check
    _
  $region31: #{ppap_forward.2} parent=0 // pred_check_branch
    %351 = sbr.rel (0) target = $region33
  $region32: #{ppap_forward.2} parent=0 // pred_region
    _
  $region33: #{ppap_forward.2} parent=0 // pred_fallthru
    _
  // Predicated region
  $region34: #{ppap_forward.2} parent=0 // pred_check
    _
  $region35: #{ppap_forward.2} parent=0 // pred_check_branch
    %353 = sbr.rel (0) target = $region37
  $region36: #{ppap_forward.2} parent=0 // pred_region
    _
  $region37: #{ppap_forward.2} parent=0 // pred_fallthru
    _

// kernel: ppap_forward.3
$region0: #{ppap_forward.3}
  #allocation0 [shape = 'u32[]', space=smem, size = 0x4, offset = 0x4, fixed_abs, tag = 'smem constant byte address 0x4 - core index']
  #allocation1 [shape = 'u32[144,128]{1,0:T(1,128)}', space=vmem, size = 0x12000, scoped, tag = 'internal scratch']
  %s0 = inlined_call_operand.vmem [shape: f32[1,32], index: 0, kind: input, shape index: {}]
  %s1 = inlined_call_operand.vmem [shape: bf16[32,128], index: 1, kind: input, shape index: {}]
  %s2 = inlined_call_operand.vmem [shape: f32[1,128], index: 2, kind: input, shape index: {}]
  %s3 = inlined_call_operand.vmem [shape: bf16[128,32], index: 3, kind: input, shape index: {}]
  %s4 = inlined_call_operand.vmem [shape: f32[1,32], index: 4, kind: input, shape index: {}]
  %s5 = inlined_call_operand.vmem [shape: bf16[32,32], index: 5, kind: input, shape index: {}]
  %s6 = inlined_call_operand.hbm [shape: f32[1,32], index: 6, kind: output, shape index: {}]
  %s7 = sld [smem:[#allocation0]]
  $region34: #{ppap_forward.3} parent=0
    _
  %s9 = ssub.s32 1, %s7
  %s10 = scalar_select 0, %s9, %s7
  $region1: #{ppap_forward.3} parent=0
    #allocation2 [shape = 'u8[512]{0}', space=vmem, size = 0x400, scoped, tag = 'output window, operand 0, single buffered']
    #allocation3 [shape = 's32[1]{0}', space=sflag, size = 0x4, scoped, tag = 'scoped memory for ppap_forward.3']
    %11 = vsyncpa [#allocation3], 0
    // Predicated region
    $region2: #{ppap_forward.3} parent=1 // pred_check
      _
    $region3: #{ppap_forward.3} parent=1 // pred_check_branch
      %13 = sbr.rel (0) target = $region5
    $region4: #{ppap_forward.3} parent=1 // pred_region
      _
    $region5: #{ppap_forward.3} parent=1 // pred_fallthru
      _
    // Predicated region
    $region6: #{ppap_forward.3} parent=1 // pred_check
      _
    $region7: #{ppap_forward.3} parent=1 // pred_check_branch
      %15 = sbr.rel (0) target = $region9
    $region8: #{ppap_forward.3} parent=1 // pred_region
      _
    $region9: #{ppap_forward.3} parent=1 // pred_fallthru
      _
    // Predicated region
    $region10: #{ppap_forward.3} parent=1 // pred_check
      _
    $region11: #{ppap_forward.3} parent=1 // pred_check_branch
      %17 = sbr.rel (0) target = $region13
    $region12: #{ppap_forward.3} parent=1 // pred_region
      _
    $region13: #{ppap_forward.3} parent=1 // pred_fallthru
      _
    // Predicated region
    $region14: #{ppap_forward.3} parent=1 // pred_check
      _
    $region15: #{ppap_forward.3} parent=1 // pred_check_branch
      %19 = sbr.rel (0) target = $region17
    $region16: #{ppap_forward.3} parent=1 // pred_region
      _
    $region17: #{ppap_forward.3} parent=1 // pred_fallthru
      _
    // Predicated region
    $region18: #{ppap_forward.3} parent=1 // pred_check
      _
    $region19: #{ppap_forward.3} parent=1 // pred_check_branch
      %21 = sbr.rel (0) target = $region21
    $region20: #{ppap_forward.3} parent=1 // pred_region
      _
    $region21: #{ppap_forward.3} parent=1 // pred_fallthru
      _
    // Predicated region
    $region22: #{ppap_forward.3} parent=1 // pred_check
      _
    $region23: #{ppap_forward.3} parent=1 // pred_check_branch
      %23 = sbr.rel (0) target = $region25
    $region24: #{ppap_forward.3} parent=1 // pred_region
      _
    $region25: #{ppap_forward.3} parent=1 // pred_fallthru
      _
    %v25 = vld [vmem:[%s0] sm:$0x1]
    %v26 = vpack.c.bf16 %v25, %v25
    %v27 = vld [vmem:[%s1] sm:$0xf]
    %v28 = vld [vmem:[%s1 + $0x4] sm:$0xf]
    %v29 = vld [vmem:[%s1 + $0x8] sm:$0xf]
    %v30 = vld [vmem:[%s1 + $0xc] sm:$0xf]
    %v31 = vld [vmem:[%s2] sm:$0x1]
    %v36 = vunpack.c.l.b16 %v27
    %v37 = vunpack.c.l.b16 %v28
    %v38 = vunpack.c.l.b16 %v29
    %v39 = vunpack.c.l.b16 %v30
    %v40 = vpack.c.b16 %v37, %v36
    %v41 = vpack.c.b16 %v39, %v38
    %vm44 = vcmask 261120
    %v46 = vsel %vm44, %v26, 0
    %48 = vmatprep.subr.bf16.mxu0 0
    %49 = vmatpush1.bf16.msra.mxu0 %v40
    %50 = vmatprep.subr.bf16.mxu0 0
    %51 = vmatpush1.bf16.msra.mxu0 %v41
    %52 = vmatprep.subr.bf16.mxu0 0
    %53 = vmatpush1.bf16.msra.mxu0 0
    %54 = vmatprep.subr.bf16.mxu0 0
    %55 = vmatpush1.bf16.msra.mxu0 0
    %56 = vmatprep.subr.bf16.mxu0 0
    %57 = vmatpush1.bf16.msra.mxu0 0
    %58 = vmatprep.subr.bf16.mxu0 0
    %59 = vmatpush1.bf16.msra.mxu0 0
    %60 = vmatprep.subr.bf16.mxu0 0
    %61 = vmatpush1.bf16.msra.mxu0 0
    %62 = vmatprep.subr.bf16.mxu0 0
    %63 = vmatpush1.bf16.msra.mxu0 0
    %64 = vmatprep.subr.bf16.mxu0 0
    %65 = vmatpush1.bf16.msra.mxu0 0
    %66 = vmatprep.subr.bf16.mxu0 0
    %67 = vmatpush1.bf16.msra.mxu0 0
    %68 = vmatprep.subr.bf16.mxu0 0
    %69 = vmatpush1.bf16.msra.mxu0 0
    %70 = vmatprep.subr.bf16.mxu0 0
    %71 = vmatpush1.bf16.msra.mxu0 0
    %72 = vmatprep.subr.bf16.mxu0 0
    %73 = vmatpush1.bf16.msra.mxu0 0
    %74 = vmatprep.subr.bf16.mxu0 0
    %75 = vmatpush1.bf16.msra.mxu0 0
    %76 = vmatprep.subr.bf16.mxu0 0
    %77 = vmatpush1.bf16.msra.mxu0 0
    %78 = vmatprep.subr.bf16.mxu0 0
    %79 = vmatpush1.bf16.msra.mxu0 0
    %80 = vmatprep.mubr.bf16.mxu0 0
    %81 = vmatmul.mubr.bf16.gmra.mrb[0].mxu0 %v46
    %v82 = vpop.f32.mrb[0].mxu0
    %v83 = vadd.f32 %v31, %v82
    %v84 = vpop.f32.mrb[0].mxu0
    %v85 = vpop.f32.mrb[0].mxu0
    %v86 = vpop.f32.mrb[0].mxu0
    %87 = vdwg.mxu0
    %v88 = vmax.f32 %v83, 0.0
    %v89 = vpack.c.bf16 %v88, %v88
    %v90 = vld [vmem:[%s3] sm:$0xf]
    %v91 = vld [vmem:[%s3 + $0x4] sm:$0xf]
    %v92 = vld [vmem:[%s3 + $0x8] sm:$0xf]
    %v93 = vld [vmem:[%s3 + $0xc] sm:$0xf]
    %v94 = vld [vmem:[%s3 + $0x10] sm:$0xf]
    %v95 = vld [vmem:[%s3 + $0x14] sm:$0xf]
    %v96 = vld [vmem:[%s3 + $0x18] sm:$0xf]
    %v97 = vld [vmem:[%s3 + $0x1c] sm:$0xf]
    %v98 = vld [vmem:[%s3 + $0x20] sm:$0xf]
    %v99 = vld [vmem:[%s3 + $0x24] sm:$0xf]
    %v100 = vld [vmem:[%s3 + $0x28] sm:$0xf]
    %v101 = vld [vmem:[%s3 + $0x2c] sm:$0xf]
    %v102 = vld [vmem:[%s3 + $0x30] sm:$0xf]
    %v103 = vld [vmem:[%s3 + $0x34] sm:$0xf]
    %v104 = vld [vmem:[%s3 + $0x38] sm:$0xf]
    %v105 = vld [vmem:[%s3 + $0x3c] sm:$0xf]
    %v106 = vld [vmem:[%s4] sm:$0x1]
    %v123 = vunpack.c.l.b16 %v90
    %v124 = vunpack.c.l.b16 %v91
    %v125 = vunpack.c.l.b16 %v92
    %v126 = vunpack.c.l.b16 %v93
    %v127 = vunpack.c.l.b16 %v94
    %v128 = vunpack.c.l.b16 %v95
    %v129 = vunpack.c.l.b16 %v96
    %v130 = vunpack.c.l.b16 %v97
    %v131 = vunpack.c.l.b16 %v98
    %v132 = vunpack.c.l.b16 %v99
    %v133 = vunpack.c.l.b16 %v100
    %v134 = vunpack.c.l.b16 %v101
    %v135 = vunpack.c.l.b16 %v102
    %v136 = vunpack.c.l.b16 %v103
    %v137 = vunpack.c.l.b16 %v104
    %v138 = vunpack.c.l.b16 %v105
    %v139 = vpack.c.b16 %v124, %v123
    %v140 = vpack.c.b16 %v126, %v125
    %v141 = vpack.c.b16 %v128, %v127
    %v142 = vpack.c.b16 %v130, %v129
    %v143 = vpack.c.b16 %v132, %v131
    %v144 = vpack.c.b16 %v134, %v133
    %v145 = vpack.c.b16 %v136, %v135
    %v146 = vpack.c.b16 %v138, %v137
    %155 = vmatprep.subr.bf16.mxu0 0
    %156 = vmatpush1.bf16.msra.mxu0 %v139
    %157 = vmatprep.subr.bf16.mxu0 0
    %158 = vmatpush1.bf16.msra.mxu0 %v140
    %159 = vmatprep.subr.bf16.mxu0 0
    %160 = vmatpush1.bf16.msra.mxu0 %v141
    %161 = vmatprep.subr.bf16.mxu0 0
    %162 = vmatpush1.bf16.msra.mxu0 %v142
    %163 = vmatprep.subr.bf16.mxu0 0
    %164 = vmatpush1.bf16.msra.mxu0 %v143
    %165 = vmatprep.subr.bf16.mxu0 0
    %166 = vmatpush1.bf16.msra.mxu0 %v144
    %167 = vmatprep.subr.bf16.mxu0 0
    %168 = vmatpush1.bf16.msra.mxu0 %v145
    %169 = vmatprep.subr.bf16.mxu0 0
    %170 = vmatpush1.bf16.msra.mxu0 %v146
    %171 = vmatprep.subr.bf16.mxu0 0
    %172 = vmatpush1.bf16.msra.mxu0 0
    %173 = vmatprep.subr.bf16.mxu0 0
    %174 = vmatpush1.bf16.msra.mxu0 0
    %175 = vmatprep.subr.bf16.mxu0 0
    %176 = vmatpush1.bf16.msra.mxu0 0
    %177 = vmatprep.subr.bf16.mxu0 0
    %178 = vmatpush1.bf16.msra.mxu0 0
    %179 = vmatprep.subr.bf16.mxu0 0
    %180 = vmatpush1.bf16.msra.mxu0 0
    %181 = vmatprep.subr.bf16.mxu0 0
    %182 = vmatpush1.bf16.msra.mxu0 0
    %183 = vmatprep.subr.bf16.mxu0 0
    %184 = vmatpush1.bf16.msra.mxu0 0
    %185 = vmatprep.subr.bf16.mxu0 0
    %186 = vmatpush1.bf16.msra.mxu0 0
    %187 = vmatprep.mubr.bf16.mxu0 0
    %188 = vmatmul.mubr.bf16.gmra.mrb[0].mxu0 %v89
    %v189 = vpop.f32.mrb[0].mxu0
    %v190 = vadd.f32 %v106, %v189
    %v191 = vpop.f32.mrb[0].mxu0
    %v192 = vpop.f32.mrb[0].mxu0
    %v193 = vpop.f32.mrb[0].mxu0
    %194 = vdwg.mxu0
    %v195 = vpack.c.bf16 %v190, %v190
    %v196 = vld [vmem:[%s5] sm:$0xf]
    %v197 = vld [vmem:[%s5 + $0x4] sm:$0xf]
    %v198 = vld [vmem:[%s5 + $0x8] sm:$0xf]
    %v199 = vld [vmem:[%s5 + $0xc] sm:$0xf]
    %v204 = vunpack.c.l.b16 %v196
    %v205 = vunpack.c.l.b16 %v197
    %v206 = vunpack.c.l.b16 %v198
    %v207 = vunpack.c.l.b16 %v199
    %v208 = vpack.c.b16 %v205, %v204
    %v209 = vpack.c.b16 %v207, %v206
    %v213 = vsel %vm44, %v195, 0
    %215 = vmatprep.subr.bf16.mxu0 0
    %216 = vmatpush1.bf16.msra.mxu0 %v208
    %217 = vmatprep.subr.bf16.mxu0 0
    %218 = vmatpush1.bf16.msra.mxu0 %v209
    %219 = vmatprep.subr.bf16.mxu0 0
    %220 = vmatpush1.bf16.msra.mxu0 0
    %221 = vmatprep.subr.bf16.mxu0 0
    %222 = vmatpush1.bf16.msra.mxu0 0
    %223 = vmatprep.subr.bf16.mxu0 0
    %224 = vmatpush1.bf16.msra.mxu0 0
    %225 = vmatprep.subr.bf16.mxu0 0
    %226 = vmatpush1.bf16.msra.mxu0 0
    %227 = vmatprep.subr.bf16.mxu0 0
    %228 = vmatpush1.bf16.msra.mxu0 0
    %229 = vmatprep.subr.bf16.mxu0 0
    %230 = vmatpush1.bf16.msra.mxu0 0
    %231 = vmatprep.subr.bf16.mxu0 0
    %232 = vmatpush1.bf16.msra.mxu0 0
    %233 = vmatprep.subr.bf16.mxu0 0
    %234 = vmatpush1.bf16.msra.mxu0 0
    %235 = vmatprep.subr.bf16.mxu0 0
    %236 = vmatpush1.bf16.msra.mxu0 0
    %237 = vmatprep.subr.bf16.mxu0 0
    %238 = vmatpush1.bf16.msra.mxu0 0
    %239 = vmatprep.subr.bf16.mxu0 0
    %240 = vmatpush1.bf16.msra.mxu0 0
    %241 = vmatprep.subr.bf16.mxu0 0
    %242 = vmatpush1.bf16.msra.mxu0 0
    %243 = vmatprep.subr.bf16.mxu0 0
    %244 = vmatpush1.bf16.msra.mxu0 0
    %245 = vmatprep.subr.bf16.mxu0 0
    %246 = vmatpush1.bf16.msra.mxu0 0
    %247 = vmatprep.mubr.bf16.mxu0 0
    %248 = vmatmul.mubr.bf16.gmra.mrb[0].mxu0 %v213
    %v249 = vpop.f32.mrb[0].mxu0
    %v250 = vadd.f32 0.0, %v249
    %v251 = vpop.f32.mrb[0].mxu0
    %v252 = vpop.f32.mrb[0].mxu0
    %v253 = vpop.f32.mrb[0].mxu0
    %254 = vdwg.mxu0
    %vm255 = vcmask 253952
    %256 = vst.msk [vmem:[#allocation2] sm:$0x1] %vm255, %v250
    // Predicated region
    $region26: #{ppap_forward.3} parent=1 // pred_check
      _
    $region27: #{ppap_forward.3} parent=1 // pred_check_branch
      %258 = sbr.rel (0) target = $region29
    $region28: #{ppap_forward.3} parent=1 // pred_region
      %s260 = ssub.s32 16, 16
      %261 = vsyncadd [#allocation3], %s260
      %s263 = sshll.u32 [#allocation2], 4
      %s264 = int_to_ptr.vmem [resolvable:$true] %s263
      %266 = dma.vmem_to_hbm [thread:$0]  %s264, 16, %s6, [#allocation3]
    $region29: #{ppap_forward.3} parent=1 // pred_fallthru
      _
    // Predicated region
    $region30: #{ppap_forward.3} parent=1 // pred_check
      _
    $region31: #{ppap_forward.3} parent=1 // pred_check_branch
      %268 = sbr.rel (0) target = $region33
    $region32: #{ppap_forward.3} parent=1 // pred_region
      %269 = dma.done [#allocation3], 16
    $region33: #{ppap_forward.3} parent=1 // pred_fallthru
      _
    %270 = vsyncpa [#allocation3], 1

</llo_original>
